<compile_context>
chip_gen: v7x
topology: tpu7x:2x2x1
jax: 0.10.0
libtpu: 0.0.40
codegen_flags: <defaults>
</compile_context>

<pallas_src>
import jax
import jax.numpy as jnp
from jax import lax
from jax.experimental import pallas as pl
from jax.experimental.pallas import tpu as pltpu

_LANE = 128


# --------------------------------------------------------------------------- #
# Kernels
# --------------------------------------------------------------------------- #
def _make_layer_blocked_kernel(residual_factor, col_tile, layer_block):
    # Python floats / ints -> jaxpr literals (never "captured constants").
    rf = float(residual_factor)
    omr = float(1.0 - residual_factor)
    tn = int(col_tile)
    lb = int(layer_block)

    def kernel(attn_ref, out_ref):
        # attn_ref: (lb, 1, S_pad, S_pad)  head-averaged attention, lb layers
        # out_ref : (1, S_pad, tn)         rolled slab (f32), resident across blocks
        j = pl.program_id(1)
        blk = pl.program_id(2)
        n_rows = out_ref.shape[1]
        s_full = attn_ref.shape[-1]

        def layer_step(a):
            # (rf*A + (1-rf)*I) @ R == rf*(A @ R) + (1-rf)*R  (residual folded).
            # A stays in its streaming dtype; R is cast to that dtype only as a
            # matmul operand so the MXU runs the bf16 path; the stored
            # accumulator (out_ref) stays f32.
            prev = out_ref[0]
            out_ref[0] = (
                rf * jnp.dot(a, prev.astype(a.dtype),
                             preferred_element_type=jnp.float32)
                + omr * prev
            )

        for i in range(lb):
            if i == 0:
                @pl.when(blk == 0)
                def _init():
                    # layer 0: rolled == I, so skip the identity matmul and write
                    # rf*A_0 + (1-rf)*I directly (column slab).
                    if tn == s_full:
                        a_cols = attn_ref[0, 0].astype(jnp.float32)
                    else:
                        start = pl.multiple_of(j * tn, _LANE)
                        a_cols = attn_ref[0, 0, :, pl.ds(start, tn)].astype(jnp.float32)
                    row = lax.broadcasted_iota(jnp.int32, (n_rows, tn), 0)
                    col = lax.broadcasted_iota(jnp.int32, (n_rows, tn), 1) + j * tn
                    eye = (row == col).astype(jnp.float32)
                    out_ref[0] = rf * a_cols + omr * eye

                @pl.when(blk > 0)
                def _step0():
                    layer_step(attn_ref[0, 0])
            else:
                layer_step(attn_ref[i, 0])

    return kernel


def _make_ktiled_kernel(residual_factor, col_tile, k_tile):
    rf = float(residual_factor)
    omr = float(1.0 - residual_factor)
    tn = int(col_tile)
    tk = int(k_tile)

    def kernel(attn_ref, out_ref, acc_ref):
        # attn_ref: (1, 1, S_pad, tk)  contraction panel of A for layer l
        # out_ref : (1, S_pad, tn)     rolled slab (f32), resident across (l, k)
        # acc_ref : (S_pad, tn) f32    partial A @ R accumulator
        j = pl.program_id(1)
        l = pl.program_id(2)
        k = pl.program_id(3)
        nk = pl.num_programs(3)
        n_rows = out_ref.shape[1]

        @pl.when(k == 0)
        def _zero():
            acc_ref[...] = jnp.zeros_like(acc_ref)

        a_panel = attn_ref[0, 0]  # (S_pad, tk), streaming dtype (bf16/f32)

        # Rows [k*tk : k*tk+tk) of the previous rolled matrix. At layer 0 the
        # rolled matrix is the identity and out_ref is uninitialized, so
        # synthesize the identity rows and select (select never computes with
        # the unselected operand).
        row = lax.broadcasted_iota(jnp.int32, (tk, tn), 0) + k * tk
        col = lax.broadcasted_iota(jnp.int32, (tk, tn), 1) + j * tn
        eye_rows = (row == col).astype(jnp.float32)
        start = pl.multiple_of(k * tk, _LANE)
        prev_rows = out_ref[0, pl.ds(start, tk), :]
        r_rows = jnp.where(l == 0, eye_rows, prev_rows)

        acc_ref[...] += jnp.dot(a_panel, r_rows.astype(a_panel.dtype),
                                preferred_element_type=jnp.float32)

        @pl.when(k == nk - 1)
        def _finish():
            rowf = lax.broadcasted_iota(jnp.int32, (n_rows, tn), 0)
            colf = lax.broadcasted_iota(jnp.int32, (n_rows, tn), 1) + j * tn
            eye_full = (rowf == colf).astype(jnp.float32)
            prev_full = jnp.where(l == 0, eye_full, out_ref[0])
            out_ref[0] = rf * acc_ref[...] + omr * prev_full

    return kernel


# --------------------------------------------------------------------------- #
# Planning helpers
# --------------------------------------------------------------------------- #
def _device_info():
    """Best-effort (is_v7x, VMEM capacity). Conservative fallbacks so the
    wrapper also works under interpret mode / CPU emulation."""
    is_v7x = False
    vmem_cap = 64 * 1024 * 1024  # conservative default (v7x per-TC VMEM)
    try:
        kind = jax.devices()[0].device_kind.lower()
        is_v7x = ("v7" in kind) or ("tpu7" in kind)
        if ("v5" in kind) or ("v6" in kind):
            vmem_cap = 128 * 1024 * 1024
    except Exception:
        pass
    try:
        vmem_cap = int(pltpu.get_tpu_info().vmem_capacity_bytes)
    except Exception:
        pass
    return is_v7x, vmem_cap


def _plan(batch, s_pad, n_layers, itemsize, is_v7x, vmem_cap,
          k_tile_override, col_split_override):
    """Returns (layer_block, col_split, col_tile, k_tile_or_None)."""
    lanes = s_pad // _LANE
    divisors = [d for d in range(1, lanes + 1) if lanes % d == 0]
    budget = int(0.75 * vmem_cap)

    # Layer blocking amortizes per-grid-step pipeline overhead at small S.
    if s_pad <= 256:
        lb = max(d for d in range(1, min(n_layers, 8) + 1) if n_layers % d == 0)
    else:
        lb = 1

    def resident_bytes(nj_):
        tn_ = s_pad // nj_
        # double-buffered f32 out slab + matmul-result / axpy / operand-cast temps
        return 2 * s_pad * tn_ * 4 + s_pad * tn_ * (8 + itemsize)

    # Output-column split: v7x megacore split only when compute-bound sized and
    # streaming bf16 (on 1-TC parts it would just re-read A), or forced larger
    # so the resident f32 slab fits VMEM at huge S.
    if col_split_override is not None:
        nj = int(col_split_override)
    else:
        nj = 1
        if (is_v7x and batch == 1 and s_pad >= 4 * _LANE
                and itemsize <= 2 and lanes % 2 == 0):
            nj = 2
        for d in divisors:
            if d >= nj and resident_bytes(d) + (2 << 20) <= budget:
                nj = d
                break
        else:
            nj = divisors[-1]
    tn = s_pad // nj

    # Untiled (full-A block) vs contraction(k)-tiled A panels.
    if k_tile_override is not None:
        tk = int(k_tile_override)
    elif 2 * lb * s_pad * s_pad * itemsize + resident_bytes(nj) + (2 << 20) <= budget:
        tk = None
    else:
        tk = _LANE
        for d in reversed(divisors):
            cand = d * _LANE
            if 2 * s_pad * cand * itemsize + resident_bytes(nj) + (2 << 20) <= budget:
                tk = cand
                break
    if tk is not None:
        lb = 1  # the k-tiled kernel handles one layer per (l, k) sweep
    return lb, nj, tn, tk


# --------------------------------------------------------------------------- #
# Public wrapper
# --------------------------------------------------------------------------- #
def attention_rollout(attention_weights_list, residual_factor=0.5,
                      stream_dtype=jnp.bfloat16, col_split=None, k_tile=None):
    """Attention rollout with residual connections.

    attention_weights_list: list of [B, H, S, S] arrays -> [B, S, S] float32.
    stream_dtype: dtype the head-averaged attention is streamed to the kernel
      in (bfloat16 by default: halves HBM traffic and uses the bf16 MXU path;
      pass jnp.float32 — or None to keep the producer dtype — for exactness).
    col_split / k_tile: testing overrides (must divide S padded to 128).
    """
    if not attention_weights_list:
        raise ValueError("Empty attention weights list")

    first = attention_weights_list[0]
    sd = jnp.dtype(stream_dtype) if stream_dtype is not None else jnp.dtype(first.dtype)

    # Head mean accumulated in f32 (matches the reference), fused into the stack,
    # then cast once to the streaming dtype.
    mean_list = [jnp.mean(a, axis=1, dtype=jnp.float32).astype(sd)
                 for a in attention_weights_list]
    stacked = jnp.stack(mean_list, axis=0)  # [L, B, S, S]
    L, B, S, _ = stacked.shape

    # Pad seq_len to a lane multiple; zero rows/cols of A keep the top-left SxS
    # block of the rollout exact, so we just slice at the end.
    S_pad = ((S + _LANE - 1) // _LANE) * _LANE
    if S_pad != S:
        stacked = jnp.pad(stacked, ((0, 0), (0, 0), (0, S_pad - S), (0, S_pad - S)))

    itemsize = stacked.dtype.itemsize
    is_v7x, vmem_cap = _device_info()
    lb, nj, tn, tk = _plan(B, S_pad, L, itemsize, is_v7x, vmem_cap, k_tile, col_split)

    resident = 2 * S_pad * tn * 4 + S_pad * tn * (8 + itemsize)
    if tk is None:
        in_bytes = 2 * lb * S_pad * S_pad * itemsize
    else:
        in_bytes = 2 * S_pad * tk * itemsize + S_pad * tn * 4  # panels + acc scratch
    vmem_limit = int(min(vmem_cap, max(32 << 20, in_bytes + resident + (4 << 20))))

    cost = pl.CostEstimate(
        flops=2 * B * L * S_pad ** 3,
        transcendentals=0,
        bytes_accessed=nj * stacked.size * itemsize + B * S_pad * S_pad * 4,
    )
    out_shape = jax.ShapeDtypeStruct((B, S_pad, S_pad), jnp.float32)

    if tk is None:
        kernel = _make_layer_blocked_kernel(residual_factor, tn, lb)
        call = pl.pallas_call(
            kernel,
            out_shape=out_shape,
            grid_spec=pltpu.PrefetchScalarGridSpec(
                num_scalar_prefetch=0,
                grid=(B, nj, L // lb),  # layer-block axis last -> resident output
                in_specs=[pl.BlockSpec((lb, 1, S_pad, S_pad),
                                       lambda b, j, blk: (blk, b, 0, 0))],
                out_specs=pl.BlockSpec((1, S_pad, tn), lambda b, j, blk: (b, 0, j)),
            ),
            compiler_params=pltpu.CompilerParams(
                dimension_semantics=("parallel", "parallel", "arbitrary"),
                vmem_limit_bytes=vmem_limit),
            cost_estimate=cost,
        )
    else:
        kernel = _make_ktiled_kernel(residual_factor, tn, tk)
        call = pl.pallas_call(
            kernel,
            out_shape=out_shape,
            grid_spec=pltpu.PrefetchScalarGridSpec(
                num_scalar_prefetch=0,
                grid=(B, nj, L, S_pad // tk),  # (l, k) innermost -> resident out/acc
                in_specs=[pl.BlockSpec((1, 1, S_pad, tk),
                                       lambda b, j, l, k: (l, b, 0, k))],
                out_specs=pl.BlockSpec((1, S_pad, tn), lambda b, j, l, k: (b, 0, j)),
                scratch_shapes=[pltpu.VMEM((S_pad, tn), jnp.float32)],
            ),
            compiler_params=pltpu.CompilerParams(
                dimension_semantics=("parallel", "parallel", "arbitrary", "arbitrary"),
                vmem_limit_bytes=vmem_limit),
            cost_estimate=cost,
        )

    out = call(stacked)
    if S_pad != S:
        out = out[:, :S, :S]
    return out


def attention_rollout_ref(attention_weights_list, residual_factor=0.5):
    """Pure-JAX reference matching the PyTorch module semantics (f32)."""
    B, H, S, _ = attention_weights_list[0].shape
    eye = jnp.eye(S, dtype=jnp.float32)[None].repeat(B, axis=0)
    rolled = eye
    for attn in attention_weights_list:
        attn_avg = jnp.mean(attn.astype(jnp.float32), axis=1)
        a_res = residual_factor * attn_avg + (1.0 - residual_factor) * eye
        rolled = jnp.matmul(a_res, rolled)
    return rolled


if __name__ == "__main__":
    key = jax.random.PRNGKey(0)
    residual_factor = 0.5

    def make_attn(k, L, B, H, S):
        keys = jax.random.split(k, L)
        return [
            jax.nn.softmax(
                jax.random.normal(kk, (B, H, S, S), dtype=jnp.float32), axis=-1
            )
            for kk in keys
        ]

    cases = [
        # exact f32 streaming path (tiny S padded to 128, layer-blocked lb=3)
        dict(B=2, H=4, S=16, L=3, kw=dict(stream_dtype=jnp.float32),
             atol=1e-5, rtol=1e-5),
        # default bf16 stream, layer-blocked (lb=4)
        dict(B=2, H=2, S=128, L=4, kw=dict(), atol=1e-3, rtol=5e-2),
        # forced 2-way output-column split (exercises the v7x megacore path)
        dict(B=1, H=2, S=256, L=3, kw=dict(col_split=2), atol=1e-3, rtol=5e-2),
        # forced contraction(k)-tiling (exercises the large-S path)
        dict(B=1, H=2, S=256, L=3, kw=dict(k_tile=128), atol=1e-3, rtol=5e-2),
    ]
    for i, c in enumerate(cases):
        k = jax.random.fold_in(key, i)
        attn_list = make_attn(k, c["L"], c["B"], c["H"], c["S"])
        out = jax.block_until_ready(
            attention_rollout(attn_list, residual_factor, **c["kw"])
        )
        ref = attention_rollout_ref(attn_list, residual_factor)
        assert out.shape == (c["B"], c["S"], c["S"]), f"bad shape for case {c}"
        assert jnp.allclose(out, ref, atol=c["atol"], rtol=c["rtol"]), f"mismatch: {c}"

    print("KERNEL_OK")
</pallas_src>

<mosaic_0001>
module attributes {stable_mosaic.version = 11 : i64} {
  func.func @kernel(%arg0: i32, %arg1: i32, %arg2: i32, %arg3: memref<3x1x128x128xf32, #tpu.memory_space<vmem>>, %arg4: memref<1x128x128xf32, #tpu.memory_space<vmem>>) attributes {dimension_semantics = [#tpu.dimension_semantics<parallel>, #tpu.dimension_semantics<parallel>, #tpu.dimension_semantics<arbitrary>], iteration_bounds = array<i64: 2, 1, 1>, scalar_prefetch = 0 : i64, scratch_operands = 0 : i64, tpu.core_type = #tpu.core_type<tc>, window_params = [{transform_indices = @transform_0, window_bounds = array<i64: 3, 1, 128, 128>}, {transform_indices = @transform_1, window_bounds = array<i64: 1, 128, 128>}]} {
    %c0_i32 = arith.constant 0 : i32
    %0 = arith.cmpi eq, %arg2, %c0_i32 : i32
    %1 = arith.extui %0 : i1 to i32
    %c0_i32_0 = arith.constant 0 : i32
    %2 = arith.cmpi ne, %1, %c0_i32_0 : i32
    scf.if %2 {
      %c0_25 = arith.constant 0 : index
      %c0_26 = arith.constant 0 : index
      %c0_27 = arith.constant 0 : index
      %c0_28 = arith.constant 0 : index
      %32 = vector.load %arg3[%c0_25, %c0_26, %c0_27, %c0_28] : memref<3x1x128x128xf32, #tpu.memory_space<vmem>>, vector<1x1x128x128xf32>
      %33 = vector.shape_cast %32 : vector<1x1x128x128xf32> to vector<128x128xf32>
      %34 = tpu.iota {dimensions = array<i32: 0>} : vector<128x128xi32>
      %35 = tpu.iota {dimensions = array<i32: 1>} : vector<128x128xi32>
      %c128_i32 = arith.constant 128 : i32
      %36 = arith.muli %arg1, %c128_i32 : i32
      %37 = vector.broadcast %36 : i32 to vector<128x128xi32>
      %38 = arith.addi %35, %37 : vector<128x128xi32>
      %39 = arith.cmpi eq, %34, %38 : vector<128x128xi32>
      %40 = arith.extui %39 : vector<128x128xi1> to vector<128x128xi32>
      %41 = arith.sitofp %40 : vector<128x128xi32> to vector<128x128xf32>
      %cst_29 = arith.constant 5.000000e-01 : f32
      %42 = vector.broadcast %cst_29 : f32 to vector<128x128xf32>
      %43 = arith.mulf %42, %33 : vector<128x128xf32>
      %cst_30 = arith.constant 5.000000e-01 : f32
      %44 = vector.broadcast %cst_30 : f32 to vector<128x128xf32>
      %45 = arith.mulf %44, %41 : vector<128x128xf32>
      %46 = arith.addf %43, %45 : vector<128x128xf32>
      %c0_31 = arith.constant 0 : index
      %c0_32 = arith.constant 0 : index
      %c0_33 = arith.constant 0 : index
      %47 = vector.load %arg4[%c0_31, %c0_32, %c0_33] : memref<1x128x128xf32, #tpu.memory_space<vmem>>, vector<1x128x128xf32>
      %48 = vector.shape_cast %47 : vector<1x128x128xf32> to vector<128x128xf32>
      %49 = vector.shape_cast %46 : vector<128x128xf32> to vector<1x128x128xf32>
      tpu.vector_store %arg4[%c0_31, %c0_32, %c0_33], %49 {strides = array<i32>} : memref<1x128x128xf32, #tpu.memory_space<vmem>>, vector<1x128x128xf32>,
    } else {
    }
    %c0_i32_1 = arith.constant 0 : i32
    %3 = arith.cmpi sgt, %arg2, %c0_i32_1 : i32
    %4 = arith.extui %3 : i1 to i32
    %c0_i32_2 = arith.constant 0 : i32
    %5 = arith.cmpi ne, %4, %c0_i32_2 : i32
    scf.if %5 {
      %c0_25 = arith.constant 0 : index
      %c0_26 = arith.constant 0 : index
      %c0_27 = arith.constant 0 : index
      %c0_28 = arith.constant 0 : index
      %32 = vector.load %arg3[%c0_25, %c0_26, %c0_27, %c0_28] : memref<3x1x128x128xf32, #tpu.memory_space<vmem>>, vector<1x1x128x128xf32>
      %33 = vector.shape_cast %32 : vector<1x1x128x128xf32> to vector<128x128xf32>
      %c0_29 = arith.constant 0 : index
      %c0_30 = arith.constant 0 : index
      %c0_31 = arith.constant 0 : index
      %34 = vector.load %arg4[%c0_29, %c0_30, %c0_31] : memref<1x128x128xf32, #tpu.memory_space<vmem>>, vector<1x128x128xf32>
      %35 = vector.shape_cast %34 : vector<1x128x128xf32> to vector<128x128xf32>
      %cst_32 = arith.constant dense<0.000000e+00> : vector<128x128xf32>
      %36 = tpu.matmul %33, %35, %cst_32 {dimension_numbers = #tpu.dot_dimension_numbers<[1], [0], [0], [1], [0, 0, 1, 1], [], []>} : vector<128x128xf32>, vector<128x128xf32>, vector<128x128xf32> -> vector<128x128xf32>
      %cst_33 = arith.constant 5.000000e-01 : f32
      %37 = vector.broadcast %cst_33 : f32 to vector<128x128xf32>
      %38 = arith.mulf %37, %36 : vector<128x128xf32>
      %cst_34 = arith.constant 5.000000e-01 : f32
      %39 = vector.broadcast %cst_34 : f32 to vector<128x128xf32>
      %40 = arith.mulf %39, %35 : vector<128x128xf32>
      %41 = arith.addf %38, %40 : vector<128x128xf32>
      %c0_35 = arith.constant 0 : index
      %c0_36 = arith.constant 0 : index
      %c0_37 = arith.constant 0 : index
      %42 = vector.load %arg4[%c0_35, %c0_36, %c0_37] : memref<1x128x128xf32, #tpu.memory_space<vmem>>, vector<1x128x128xf32>
      %43 = vector.shape_cast %42 : vector<1x128x128xf32> to vector<128x128xf32>
      %44 = vector.shape_cast %41 : vector<128x128xf32> to vector<1x128x128xf32>
      tpu.vector_store %arg4[%c0_35, %c0_36, %c0_37], %44 {strides = array<i32>} : memref<1x128x128xf32, #tpu.memory_space<vmem>>, vector<1x128x128xf32>,
    } else {
    }
    %c1 = arith.constant 1 : index
    %c0 = arith.constant 0 : index
    %c0_3 = arith.constant 0 : index
    %c0_4 = arith.constant 0 : index
    %6 = vector.load %arg3[%c1, %c0, %c0_3, %c0_4] : memref<3x1x128x128xf32, #tpu.memory_space<vmem>>, vector<1x1x128x128xf32>
    %7 = vector.shape_cast %6 : vector<1x1x128x128xf32> to vector<128x128xf32>
    %c0_5 = arith.constant 0 : index
    %c0_6 = arith.constant 0 : index
    %c0_7 = arith.constant 0 : index
    %8 = vector.load %arg4[%c0_5, %c0_6, %c0_7] : memref<1x128x128xf32, #tpu.memory_space<vmem>>, vector<1x128x128xf32>
    %9 = vector.shape_cast %8 : vector<1x128x128xf32> to vector<128x128xf32>
    %cst = arith.constant dense<0.000000e+00> : vector<128x128xf32>
    %10 = tpu.matmul %7, %9, %cst {dimension_numbers = #tpu.dot_dimension_numbers<[1], [0], [0], [1], [0, 0, 1, 1], [], []>} : vector<128x128xf32>, vector<128x128xf32>, vector<128x128xf32> -> vector<128x128xf32>
    %cst_8 = arith.constant 5.000000e-01 : f32
    %11 = vector.broadcast %cst_8 : f32 to vector<128x128xf32>
    %12 = arith.mulf %11, %10 : vector<128x128xf32>
    %cst_9 = arith.constant 5.000000e-01 : f32
    %13 = vector.broadcast %cst_9 : f32 to vector<128x128xf32>
    %14 = arith.mulf %13, %9 : vector<128x128xf32>
    %15 = arith.addf %12, %14 : vector<128x128xf32>
    %c0_10 = arith.constant 0 : index
    %c0_11 = arith.constant 0 : index
    %c0_12 = arith.constant 0 : index
    %16 = vector.load %arg4[%c0_10, %c0_11, %c0_12] : memref<1x128x128xf32, #tpu.memory_space<vmem>>, vector<1x128x128xf32>
    %17 = vector.shape_cast %16 : vector<1x128x128xf32> to vector<128x128xf32>
    %18 = vector.shape_cast %15 : vector<128x128xf32> to vector<1x128x128xf32>
    tpu.vector_store %arg4[%c0_10, %c0_11, %c0_12], %18 {strides = array<i32>} : memref<1x128x128xf32, #tpu.memory_space<vmem>>, vector<1x128x128xf32>,
    %c2 = arith.constant 2 : index
    %c0_13 = arith.constant 0 : index
    %c0_14 = arith.constant 0 : index
    %c0_15 = arith.constant 0 : index
    %19 = vector.load %arg3[%c2, %c0_13, %c0_14, %c0_15] : memref<3x1x128x128xf32, #tpu.memory_space<vmem>>, vector<1x1x128x128xf32>
    %20 = vector.shape_cast %19 : vector<1x1x128x128xf32> to vector<128x128xf32>
    %c0_16 = arith.constant 0 : index
    %c0_17 = arith.constant 0 : index
    %c0_18 = arith.constant 0 : index
    %21 = vector.load %arg4[%c0_16, %c0_17, %c0_18] : memref<1x128x128xf32, #tpu.memory_space<vmem>>, vector<1x128x128xf32>
    %22 = vector.shape_cast %21 : vector<1x128x128xf32> to vector<128x128xf32>
    %cst_19 = arith.constant dense<0.000000e+00> : vector<128x128xf32>
    %23 = tpu.matmul %20, %22, %cst_19 {dimension_numbers = #tpu.dot_dimension_numbers<[1], [0], [0], [1], [0, 0, 1, 1], [], []>} : vector<128x128xf32>, vector<128x128xf32>, vector<128x128xf32> -> vector<128x128xf32>
    %cst_20 = arith.constant 5.000000e-01 : f32
    %24 = vector.broadcast %cst_20 : f32 to vector<128x128xf32>
    %25 = arith.mulf %24, %23 : vector<128x128xf32>
    %cst_21 = arith.constant 5.000000e-01 : f32
    %26 = vector.broadcast %cst_21 : f32 to vector<128x128xf32>
    %27 = arith.mulf %26, %22 : vector<128x128xf32>
    %28 = arith.addf %25, %27 : vector<128x128xf32>
    %c0_22 = arith.constant 0 : index
    %c0_23 = arith.constant 0 : index
    %c0_24 = arith.constant 0 : index
    %29 = vector.load %arg4[%c0_22, %c0_23, %c0_24] : memref<1x128x128xf32, #tpu.memory_space<vmem>>, vector<1x128x128xf32>
    %30 = vector.shape_cast %29 : vector<1x128x128xf32> to vector<128x128xf32>
    %31 = vector.shape_cast %28 : vector<128x128xf32> to vector<1x128x128xf32>
    tpu.vector_store %arg4[%c0_22, %c0_23, %c0_24], %31 {strides = array<i32>} : memref<1x128x128xf32, #tpu.memory_space<vmem>>, vector<1x128x128xf32>,
    return
  }
  func.func @transform_0(%arg0: i32, %arg1: i32, %arg2: i32) -> (i32, i32, i32, i32) {
    %c0_i32 = arith.constant 0 : i32
    %c0_i32_0 = arith.constant 0 : i32
    %c0_i32_1 = arith.constant 0 : i32
    return %arg2, %arg0, %c0_i32, %c0_i32_0 : i32, i32, i32, i32
  }
  func.func @transform_1(%arg0: i32, %arg1: i32, %arg2: i32) -> (i32, i32, i32) {
    %c0_i32 = arith.constant 0 : i32
    %c0_i32_0 = arith.constant 0 : i32
    return %arg0, %c0_i32, %arg1 : i32, i32, i32
  }
}

</mosaic_0001>

<llo_original>
// kernel: tpu_custom_call.1
$region0: #{tpu_custom_call.1}
  #allocation0 [shape = 'u32[]', space=smem, size = 0x4, offset = 0x4, fixed_abs, tag = 'smem constant byte address 0x4 - core index']
  #allocation1 [shape = 'u32[144,128]{1,0:T(1,128)}', space=vmem, size = 0x12000, scoped, tag = 'internal scratch']
  #allocation6 [shape = 's32[]', space=sflag, size = 0x4, offset = 0, fixed_abs, tag = 'sflag constant byte address 0x0 - dummy sync flag']
  %s0 = inlined_call_operand.hbm [shape: f32[3,2,128,128], index: 0, kind: input, shape index: {}]
  %s1 = inlined_call_operand.hbm [shape: f32[2,128,128], index: 1, kind: output, shape index: {}]
  %s2 = sld [smem:[#allocation0]]
  $region49: #{tpu_custom_call.1} parent=0
    _
  %s4 = ssub.s32 1, %s2
  %s5 = scalar_select 0, %s4, %s2
  $region1: #{tpu_custom_call.1} parent=0
    #allocation2 [shape = 'u8[393216]{0}', space=vmem, size = 0x60000, scoped, tag = 'input window, operand 0']
    #allocation3 [shape = 's32[2]{0}', space=sflag, size = 0x8, scoped, tag = 'scoped memory for tpu_custom_call.1']
    #allocation4 [shape = 's32[2]{0}', space=sflag, size = 0x8, scoped, tag = 'scoped memory for tpu_custom_call.1']
    #allocation5 [shape = 'u8[131072]{0}', space=vmem, size = 0x20000, scoped, tag = 'output window, operand 0']
    %6 = vsyncpa [#allocation3], 0
    %s7 = scalar_lea.sflag [#allocation3], 1
    %8 = vsyncpa %s7, 0
    %9 = vsyncpa [#allocation4], 0
    %s10 = scalar_lea.sflag [#allocation4], 1
    %11 = vsyncpa %s10, 0
    loop: start=0, step=1, limit=4
    $region2: #{tpu_custom_call.1} parent=1 // loop_pre_header
      _
    $region3: #{tpu_custom_call.1} parent=1 // loop_header
      %s13 = sphi 0, %s17
      %p14 = scmp.ge.s32.totalorder %s13, 4
      %s20 = sphi 0, %s39
      %s21 = sphi 0, %s35
      %s22 = sphi 0, %s31
      %s23 = sphi 0, %s20
      %s24 = sphi 0, %s21
      %s25 = sphi 0, %s22
      %s26 = sphi 0, %s23
      %s27 = sphi 0, %s24
      %s28 = sphi 0, %s25
      %s44 = sphi 0, %s46
      %s47 = sphi 0, %s44
      %s48 = sphi 0, %s47
      %s64 = sphi 0, %s48
      %s72 = sphi 0, %s74
      %s75 = sphi 0, %s72
      %s76 = sphi 0, %s75
      %s92 = sphi 0, %s76
    $region4: #{tpu_custom_call.1} parent=1 // loop_header_branch
      %16 = sbr.rel (%p14) target = $region8
    $region5: #{tpu_custom_call.1} parent=1 // loop_body
      %s18 = ssub.s32 %s13, 1
      %s19 = ssub.s32 %s13, 2
      %s29 = sadd.s32 1, %s22
      %p30 = scmp.ge.s32.totalorder %s29, 1
      %s31 = scalar_select %p30, 0, %s29
      %s32 = sadd.s32 1, %s21
      %s33 = scalar_select %p30, %s32, %s21
      %p34 = scmp.ge.s32.totalorder %s33, 1
      %s35 = scalar_select %p34, 0, %s33
      %s36 = sadd.s32 1, %s20
      %s37 = scalar_select %p34, %s36, %s20
      %p38 = scmp.ge.s32.totalorder %s37, 2
      %s39 = scalar_select %p38, 0, %s37
      %s40 = ssub.s32 %s22, %s31
      %s41 = ssub.s32 %s20, %s39
      %s42 = sor.u32 %s40, %s41
      %p43 = scmp.eq.s32.totalorder %s42, 0
      %s45 = sadd.s32 %s44, 1
      %s46 = scalar_select %p43, %s44, %s45
      %p49 = pneg %p43
      %p50 = scmp.eq.s32.totalorder %s13, 1
      %p51 = por %p49, %p50
      %p52 = scmp.ne.s32.totalorder %s44, %s47
      %p53 = scmp.eq.s32.totalorder %s13, 0
      %p54 = por %p52, %p53
      %p55 = scmp.ne.s32.totalorder %s44, %s47
      %p56 = scmp.eq.s32.totalorder %s18, 1
      %p57 = por %p55, %p56
      %p58 = scmp.ne.s32.totalorder %s47, %s48
      %p59 = scmp.eq.s32.totalorder %s18, 0
      %p60 = por %p58, %p59
      %p61 = scmp.ne.s32.totalorder %s47, %s48
      %p62 = scmp.eq.s32.totalorder %s19, 1
      %p63 = por %p61, %p62
      %p65 = scmp.ne.s32.totalorder %s48, %s64
      %p66 = scmp.eq.s32.totalorder %s19, 0
      %p67 = por %p65, %p66
      %s68 = ssub.s32 %s20, %s39
      %s69 = ssub.s32 %s21, %s35
      %s70 = sor.u32 %s68, %s69
      %p71 = scmp.eq.s32.totalorder %s70, 0
      %s73 = sadd.s32 %s72, 1
      %s74 = scalar_select %p71, %s72, %s73
      %p77 = pneg %p71
      %p78 = scmp.eq.s32.totalorder %s13, 1
      %p79 = por %p77, %p78
      %p80 = scmp.ne.s32.totalorder %s72, %s75
      %p81 = scmp.eq.s32.totalorder %s13, 0
      %p82 = por %p80, %p81
      %p83 = scmp.ne.s32.totalorder %s72, %s75
      %p84 = scmp.eq.s32.totalorder %s18, 1
      %p85 = por %p83, %p84
      %p86 = scmp.ne.s32.totalorder %s75, %s76
      %p87 = scmp.eq.s32.totalorder %s18, 0
      %p88 = por %p86, %p87
      %p89 = scmp.ne.s32.totalorder %s75, %s76
      %p90 = scmp.eq.s32.totalorder %s19, 1
      %p91 = por %p89, %p90
      %p93 = scmp.ne.s32.totalorder %s76, %s92
      %p94 = scmp.eq.s32.totalorder %s19, 0
      %p95 = por %p93, %p94
      %p96 = scmp.le.s32.totalorder 1, %s13
      %p97 = scmp.lt.s32.totalorder %s13, 3
      %p98 = pnand %p96, %p97
      %p99 = pneg %p98
      // Predicated region
      $region9: #{tpu_custom_call.1} parent=5 // pred_check
        _
      $region10: #{tpu_custom_call.1} parent=5 // pred_check_branch
        %101 = sbr.rel (%p98) target = $region12
      $region11: #{tpu_custom_call.1} parent=5 // pred_region
        %s102 = ssub.s32 %s13, 1
      $region12: #{tpu_custom_call.1} parent=5 // pred_fallthru
        _
      %p103 = scmp.lt.s32.totalorder %s13, 2
      // Predicated region
      $region13: #{tpu_custom_call.1} parent=5 // pred_check
        %p104 = pneg %p103
      $region14: #{tpu_custom_call.1} parent=5 // pred_check_branch
        %106 = sbr.rel (%p104) target = $region16
      $region15: #{tpu_custom_call.1} parent=5 // pred_region
        // Predicated region
        $region17: #{tpu_custom_call.1} parent=15 // pred_check
          %p107 = pneg %p54
        $region18: #{tpu_custom_call.1} parent=15 // pred_check_branch
          %109 = sbr.rel (%p107) target = $region20
        $region19: #{tpu_custom_call.1} parent=15 // pred_region
          #allocation7 [shape = 'u32[6]{0}', space=smem, size = 0x18, scoped, tag = 'DMA stride descriptor']
          %s110 = sand.u32 %s44, 1
          %s111 = scalar_lea.sflag [#allocation3], %s110
          %s112 = sand.u32 %s44, 1
          %s113 = smul.addr %s112, 384
          %s114 = scalar_lea.vmem [#allocation2], %s113
          %s115 = smul.u32 3, %s22
          %s117 = ssub.s32 6144, 6144
          %118 = vsyncadd %s111, %s117
          %s119 = smul.addr %s20, 16
          %s120 = smul.addr %s115, 32
          %s121 = sadd.s32 %s119, %s120
          %s122 = smul.addr %s121, 128
          %s123 = scalar_lea.hbm %s0, %s122
          %s125 = sshll.u32 1, 14
          %s126 = sxor.u32 4294967295, %s125
          %s128 = sld [smem:[#allocation0]]
          %s129 = sadd.s32 2, %s128
          %s131 = sshll.u32 7, 26
          %s132 = sxor.u32 4294967295, %s131
          %s133 = sand.u32 0, %s132
          %s134 = sshll.u32 %s129, 26
          %s135 = sor.u32 %s133, %s134
          %s136 = sshll.u32 %s114, 4
          %s137 = int_to_ptr.vmem [resolvable:$true] %s136
          %143 = sst [smem:[#allocation7]] 4096
          %s144 = scalar_lea.smem [#allocation7], 1
          %145 = sst [smem:[%s144]] 2048
          %s146 = scalar_lea.smem [#allocation7], 2
          %147 = sst [smem:[%s146]] 16
          %s148 = scalar_lea.smem [#allocation7], 3
          %149 = sst [smem:[%s148]] 128
          %s150 = scalar_lea.smem [#allocation7], 4
          %151 = sst [smem:[%s150]] 128
          %s152 = scalar_lea.smem [#allocation7], 5
          %153 = sst [smem:[%s152]] 8
          %155 = dma.general %s123, 6144, %s137, %s111, [#allocation6], [#allocation7], %s135, 0
        $region20: #{tpu_custom_call.1} parent=15 // pred_fallthru
          _
      $region16: #{tpu_custom_call.1} parent=5 // pred_fallthru
        _
      %p156 = scmp.le.s32.totalorder 1, %s13
      %p157 = scmp.lt.s32.totalorder %s13, 3
      %p158 = pnand %p156, %p157
      %p159 = pneg %p158
      // Predicated region
      $region21: #{tpu_custom_call.1} parent=5 // pred_check
        _
      $region22: #{tpu_custom_call.1} parent=5 // pred_check_branch
        %161 = sbr.rel (%p158) target = $region24
      $region23: #{tpu_custom_call.1} parent=5 // pred_region
        %s162 = ssub.s32 %s13, 1
        %s163 = sand.u32 %s47, 1
        %s164 = scalar_lea.sflag [#allocation3], %s163
        %s165 = sand.u32 %s47, 1
        %s166 = smul.addr %s165, 384
        %s167 = scalar_lea.vmem [#allocation2], %s166
        // Predicated region
        $region25: #{tpu_custom_call.1} parent=23 // pred_check
          %p168 = pneg %p60
        $region26: #{tpu_custom_call.1} parent=23 // pred_check_branch
          %170 = sbr.rel (%p168) target = $region28
        $region27: #{tpu_custom_call.1} parent=23 // pred_region
          %171 = dma.done %s164, 6144
        $region28: #{tpu_custom_call.1} parent=23 // pred_fallthru
          _
        %s172 = sand.u32 %s47, 1
        %s173 = scalar_lea.sflag [#allocation3], %s172
        %s174 = sand.u32 %s47, 1
        %s175 = smul.addr %s174, 384
        %s176 = scalar_lea.vmem [#allocation2], %s175
        %p177 = pneg %p60
        %p178 = pneg %p57
        %p179 = pneg %p88
        %p180 = pneg %p85
        %s181 = sand.u32 %s75, 1
        %s182 = scalar_lea.sflag [#allocation4], %s181
        %s183 = sand.u32 %s75, 1
        %s184 = smul.addr %s183, 128
        %s185 = scalar_lea.vmem [#allocation5], %s184
        %s186 = smul.u32 3, %s25
        %p187 = scmp.eq.s32.totalorder %s25, 0
        // Predicated region
        $region29: #{tpu_custom_call.1} parent=23 // pred_check
          %p188 = pneg %p187
        $region30: #{tpu_custom_call.1} parent=23 // pred_check_branch
          %190 = sbr.rel (%p188) target = $region32
        $region31: #{tpu_custom_call.1} parent=23 // pred_region
          %v191 = vld [vmem:[%s167] sm:$0xff]
          %v192 = vld [vmem:[%s167 + $0x8] sm:$0xff]
          %v193 = vld [vmem:[%s167 + $0x10] sm:$0xff]
          %v194 = vld [vmem:[%s167 + $0x18] sm:$0xff]
          %v195 = vld [vmem:[%s167 + $0x20] sm:$0xff]
          %v196 = vld [vmem:[%s167 + $0x28] sm:$0xff]
          %v197 = vld [vmem:[%s167 + $0x30] sm:$0xff]
          %v198 = vld [vmem:[%s167 + $0x38] sm:$0xff]
          %v199 = vld [vmem:[%s167 + $0x40] sm:$0xff]
          %v200 = vld [vmem:[%s167 + $0x48] sm:$0xff]
          %v201 = vld [vmem:[%s167 + $0x50] sm:$0xff]
          %v202 = vld [vmem:[%s167 + $0x58] sm:$0xff]
          %v203 = vld [vmem:[%s167 + $0x60] sm:$0xff]
          %v204 = vld [vmem:[%s167 + $0x68] sm:$0xff]
          %v205 = vld [vmem:[%s167 + $0x70] sm:$0xff]
          %v206 = vld [vmem:[%s167 + $0x78] sm:$0xff]
          %v207 = vlaneseq
          %v208 = vshrl.u32 %v207, 7
          %v209 = vadd.s32 %v208, 8
          %v210 = vadd.s32 %v208, 16
          %v211 = vadd.s32 %v208, 24
          %v212 = vadd.s32 %v208, 32
          %v213 = vadd.s32 %v208, 40
          %v214 = vadd.s32 %v208, 48
          %v215 = vadd.s32 %v208, 56
          %v216 = vadd.s32 %v208, 64
          %v217 = vadd.s32 %v208, 72
          %v218 = vadd.s32 %v208, 80
          %v219 = vadd.s32 %v208, 88
          %v220 = vadd.s32 %v208, 96
          %v221 = vadd.s32 %v208, 104
          %v222 = vadd.s32 %v208, 112
          %v223 = vadd.s32 %v208, 120
          %v224 = vlaneseq
          %v225 = vand.u32 %v224, 127
          %s226 = smul.u32 %s24, 128
          %v227 = vstv %s226
          %v228 = vadd.s32 %v225, %v227
          %vm229 = vcmp.eq.s32.totalorder %v208, %v228
          %vm230 = vcmp.eq.s32.totalorder %v209, %v228
          %vm231 = vcmp.eq.s32.totalorder %v210, %v228
          %vm232 = vcmp.eq.s32.totalorder %v211, %v228
          %vm233 = vcmp.eq.s32.totalorder %v212, %v228
          %vm234 = vcmp.eq.s32.totalorder %v213, %v228
          %vm235 = vcmp.eq.s32.totalorder %v214, %v228
          %vm236 = vcmp.eq.s32.totalorder %v215, %v228
          %vm237 = vcmp.eq.s32.totalorder %v216, %v228
          %vm238 = vcmp.eq.s32.totalorder %v217, %v228
          %vm239 = vcmp.eq.s32.totalorder %v218, %v228
          %vm240 = vcmp.eq.s32.totalorder %v219, %v228
          %vm241 = vcmp.eq.s32.totalorder %v220, %v228
          %vm242 = vcmp.eq.s32.totalorder %v221, %v228
          %vm243 = vcmp.eq.s32.totalorder %v222, %v228
          %vm244 = vcmp.eq.s32.totalorder %v223, %v228
          %v245 = vsel %vm229, 1, 0
          %v246 = vsel %vm230, 1, 0
          %v247 = vsel %vm231, 1, 0
          %v248 = vsel %vm232, 1, 0
          %v249 = vsel %vm233, 1, 0
          %v250 = vsel %vm234, 1, 0
          %v251 = vsel %vm235, 1, 0
          %v252 = vsel %vm236, 1, 0
          %v253 = vsel %vm237, 1, 0
          %v254 = vsel %vm238, 1, 0
          %v255 = vsel %vm239, 1, 0
          %v256 = vsel %vm240, 1, 0
          %v257 = vsel %vm241, 1, 0
          %v258 = vsel %vm242, 1, 0
          %v259 = vsel %vm243, 1, 0
          %v260 = vsel %vm244, 1, 0
          %v261 = vcvt.s32.f32 %v245
          %v262 = vcvt.s32.f32 %v246
          %v263 = vcvt.s32.f32 %v247
          %v264 = vcvt.s32.f32 %v248
          %v265 = vcvt.s32.f32 %v249
          %v266 = vcvt.s32.f32 %v250
          %v267 = vcvt.s32.f32 %v251
          %v268 = vcvt.s32.f32 %v252
          %v269 = vcvt.s32.f32 %v253
          %v270 = vcvt.s32.f32 %v254
          %v271 = vcvt.s32.f32 %v255
          %v272 = vcvt.s32.f32 %v256
          %v273 = vcvt.s32.f32 %v257
          %v274 = vcvt.s32.f32 %v258
          %v275 = vcvt.s32.f32 %v259
          %v276 = vcvt.s32.f32 %v260
          %v277 = vmul.f32 %v191, 0.5
          %v278 = vmul.f32 %v192, 0.5
          %v279 = vmul.f32 %v193, 0.5
          %v280 = vmul.f32 %v194, 0.5
          %v281 = vmul.f32 %v195, 0.5
          %v282 = vmul.f32 %v196, 0.5
          %v283 = vmul.f32 %v197, 0.5
          %v284 = vmul.f32 %v198, 0.5
          %v285 = vmul.f32 %v199, 0.5
          %v286 = vmul.f32 %v200, 0.5
          %v287 = vmul.f32 %v201, 0.5
          %v288 = vmul.f32 %v202, 0.5
          %v289 = vmul.f32 %v203, 0.5
          %v290 = vmul.f32 %v204, 0.5
          %v291 = vmul.f32 %v205, 0.5
          %v292 = vmul.f32 %v206, 0.5
          %v293 = vmul.f32 %v261, 0.5
          %v294 = vmul.f32 %v262, 0.5
          %v295 = vmul.f32 %v263, 0.5
          %v296 = vmul.f32 %v264, 0.5
          %v297 = vmul.f32 %v265, 0.5
          %v298 = vmul.f32 %v266, 0.5
          %v299 = vmul.f32 %v267, 0.5
          %v300 = vmul.f32 %v268, 0.5
          %v301 = vmul.f32 %v269, 0.5
          %v302 = vmul.f32 %v270, 0.5
          %v303 = vmul.f32 %v271, 0.5
          %v304 = vmul.f32 %v272, 0.5
          %v305 = vmul.f32 %v273, 0.5
          %v306 = vmul.f32 %v274, 0.5
          %v307 = vmul.f32 %v275, 0.5
          %v308 = vmul.f32 %v276, 0.5
          %v309 = vadd.f32 %v277, %v293
          %v310 = vadd.f32 %v278, %v294
          %v311 = vadd.f32 %v279, %v295
          %v312 = vadd.f32 %v280, %v296
          %v313 = vadd.f32 %v281, %v297
          %v314 = vadd.f32 %v282, %v298
          %v315 = vadd.f32 %v283, %v299
          %v316 = vadd.f32 %v284, %v300
          %v317 = vadd.f32 %v285, %v301
          %v318 = vadd.f32 %v286, %v302
          %v319 = vadd.f32 %v287, %v303
          %v320 = vadd.f32 %v288, %v304
          %v321 = vadd.f32 %v289, %v305
          %v322 = vadd.f32 %v290, %v306
          %v323 = vadd.f32 %v291, %v307
          %v324 = vadd.f32 %v292, %v308
          %325 = vst [vmem:[%s185] sm:$0xff] %v309
          %326 = vst [vmem:[%s185 + $0x8] sm:$0xff] %v310
          %327 = vst [vmem:[%s185 + $0x10] sm:$0xff] %v311
          %328 = vst [vmem:[%s185 + $0x18] sm:$0xff] %v312
          %329 = vst [vmem:[%s185 + $0x20] sm:$0xff] %v313
          %330 = vst [vmem:[%s185 + $0x28] sm:$0xff] %v314
          %331 = vst [vmem:[%s185 + $0x30] sm:$0xff] %v315
          %332 = vst [vmem:[%s185 + $0x38] sm:$0xff] %v316
          %333 = vst [vmem:[%s185 + $0x40] sm:$0xff] %v317
          %334 = vst [vmem:[%s185 + $0x48] sm:$0xff] %v318
          %335 = vst [vmem:[%s185 + $0x50] sm:$0xff] %v319
          %336 = vst [vmem:[%s185 + $0x58] sm:$0xff] %v320
          %337 = vst [vmem:[%s185 + $0x60] sm:$0xff] %v321
          %338 = vst [vmem:[%s185 + $0x68] sm:$0xff] %v322
          %339 = vst [vmem:[%s185 + $0x70] sm:$0xff] %v323
          %340 = vst [vmem:[%s185 + $0x78] sm:$0xff] %v324
        $region32: #{tpu_custom_call.1} parent=23 // pred_fallthru
          _
        %p341 = scmp.gt.s32.totalorder %s25, 0
        // Predicated region
        $region33: #{tpu_custom_call.1} parent=23 // pred_check
          %p342 = pneg %p341
        $region34: #{tpu_custom_call.1} parent=23 // pred_check_branch
          %344 = sbr.rel (%p342) target = $region36
        $region35: #{tpu_custom_call.1} parent=23 // pred_region
          %v345 = vld [vmem:[%s167] sm:$0xff]
          %v346 = vld [vmem:[%s167 + $0x8] sm:$0xff]
          %v347 = vld [vmem:[%s167 + $0x10] sm:$0xff]
          %v348 = vld [vmem:[%s167 + $0x18] sm:$0xff]
          %v349 = vld [vmem:[%s167 + $0x20] sm:$0xff]
          %v350 = vld [vmem:[%s167 + $0x28] sm:$0xff]
          %v351 = vld [vmem:[%s167 + $0x30] sm:$0xff]
          %v352 = vld [vmem:[%s167 + $0x38] sm:$0xff]
          %v353 = vld [vmem:[%s167 + $0x40] sm:$0xff]
          %v354 = vld [vmem:[%s167 + $0x48] sm:$0xff]
          %v355 = vld [vmem:[%s167 + $0x50] sm:$0xff]
          %v356 = vld [vmem:[%s167 + $0x58] sm:$0xff]
          %v357 = vld [vmem:[%s167 + $0x60] sm:$0xff]
          %v358 = vld [vmem:[%s167 + $0x68] sm:$0xff]
          %v359 = vld [vmem:[%s167 + $0x70] sm:$0xff]
          %v360 = vld [vmem:[%s167 + $0x78] sm:$0xff]
          %v361 = vld [vmem:[%s185] sm:$0xff]
          %v362 = vld [vmem:[%s185 + $0x8] sm:$0xff]
          %v363 = vld [vmem:[%s185 + $0x10] sm:$0xff]
          %v364 = vld [vmem:[%s185 + $0x18] sm:$0xff]
          %v365 = vld [vmem:[%s185 + $0x20] sm:$0xff]
          %v366 = vld [vmem:[%s185 + $0x28] sm:$0xff]
          %v367 = vld [vmem:[%s185 + $0x30] sm:$0xff]
          %v368 = vld [vmem:[%s185 + $0x38] sm:$0xff]
          %v369 = vld [vmem:[%s185 + $0x40] sm:$0xff]
          %v370 = vld [vmem:[%s185 + $0x48] sm:$0xff]
          %v371 = vld [vmem:[%s185 + $0x50] sm:$0xff]
          %v372 = vld [vmem:[%s185 + $0x58] sm:$0xff]
          %v373 = vld [vmem:[%s185 + $0x60] sm:$0xff]
          %v374 = vld [vmem:[%s185 + $0x68] sm:$0xff]
          %v375 = vld [vmem:[%s185 + $0x70] sm:$0xff]
          %v376 = vld [vmem:[%s185 + $0x78] sm:$0xff]
          %377 = vmatprep.subr.mxu0 0.0
          %378 = vmatpush1.msra.mxu0 %v361
          %379 = vmatprep.subr.mxu0 0.0
          %380 = vmatpush1.msra.mxu0 %v362
          %381 = vmatprep.subr.mxu0 0.0
          %382 = vmatpush1.msra.mxu0 %v363
          %383 = vmatprep.subr.mxu0 0.0
          %384 = vmatpush1.msra.mxu0 %v364
          %385 = vmatprep.subr.mxu0 0.0
          %386 = vmatpush1.msra.mxu0 %v365
          %387 = vmatprep.subr.mxu0 0.0
          %388 = vmatpush1.msra.mxu0 %v366
          %389 = vmatprep.subr.mxu0 0.0
          %390 = vmatpush1.msra.mxu0 %v367
          %391 = vmatprep.subr.mxu0 0.0
          %392 = vmatpush1.msra.mxu0 %v368
          %393 = vmatprep.subr.mxu0 0.0
          %394 = vmatpush1.msra.mxu0 %v369
          %395 = vmatprep.subr.mxu0 0.0
          %396 = vmatpush1.msra.mxu0 %v370
          %397 = vmatprep.subr.mxu0 0.0
          %398 = vmatpush1.msra.mxu0 %v371
          %399 = vmatprep.subr.mxu0 0.0
          %400 = vmatpush1.msra.mxu0 %v372
          %401 = vmatprep.subr.mxu0 0.0
          %402 = vmatpush1.msra.mxu0 %v373
          %403 = vmatprep.subr.mxu0 0.0
          %404 = vmatpush1.msra.mxu0 %v374
          %405 = vmatprep.subr.mxu0 0.0
          %406 = vmatpush1.msra.mxu0 %v375
          %407 = vmatprep.subr.mxu0 0.0
          %408 = vmatpush1.msra.mxu0 %v376
          %409 = vmatprep.subr.mxu0 0.0
          %410 = vmatpush1.msra.mxu0 0.0
          %411 = vmatprep.subr.mxu0 0.0
          %412 = vmatpush1.msra.mxu0 0.0
          %413 = vmatprep.subr.mxu0 0.0
          %414 = vmatpush1.msra.mxu0 0.0
          %415 = vmatprep.subr.mxu0 0.0
          %416 = vmatpush1.msra.mxu0 0.0
          %417 = vmatprep.subr.mxu0 0.0
          %418 = vmatpush1.msra.mxu0 0.0
          %419 = vmatprep.subr.mxu0 0.0
          %420 = vmatpush1.msra.mxu0 0.0
          %421 = vmatprep.subr.mxu0 0.0
          %422 = vmatpush1.msra.mxu0 0.0
          %423 = vmatprep.subr.mxu0 0.0
          %424 = vmatpush1.msra.mxu0 0.0
          %425 = vmatprep.subr.mxu0 0.0
          %426 = vmatpush1.msra.mxu0 0.0
          %427 = vmatprep.subr.mxu0 0.0
          %428 = vmatpush1.msra.mxu0 0.0
          %429 = vmatprep.subr.mxu0 0.0
          %430 = vmatpush1.msra.mxu0 0.0
          %431 = vmatprep.subr.mxu0 0.0
          %432 = vmatpush1.msra.mxu0 0.0
          %433 = vmatprep.subr.mxu0 0.0
          %434 = vmatpush1.msra.mxu0 0.0
          %435 = vmatprep.subr.mxu0 0.0
          %436 = vmatpush1.msra.mxu0 0.0
          %437 = vmatprep.subr.mxu0 0.0
          %438 = vmatpush1.msra.mxu0 0.0
          %439 = vmatprep.subr.mxu0 0.0
          %440 = vmatpush1.msra.mxu0 0.0
          %441 = vmatprep.mubr.f32.mxu0 0.0
          %442 = vmatmul.mubr.f32.gmra.mrb[0].mxu0 %v345
          %v443 = vpop.f32.mrb[0].mxu0
          %v444 = vadd.f32 0.0, %v443
          %v445 = vpop.f32.mrb[0].mxu0
          %446 = vmatprep.mubr.f32.mxu0 0.0
          %447 = vmatmul.mubr.f32.gmra.mrb[0].mxu0 %v346
          %v448 = vpop.f32.mrb[0].mxu0
          %v449 = vadd.f32 0.0, %v448
          %v450 = vpop.f32.mrb[0].mxu0
          %451 = vmatprep.mubr.f32.mxu0 0.0
          %452 = vmatmul.mubr.f32.gmra.mrb[0].mxu0 %v347
          %v453 = vpop.f32.mrb[0].mxu0
          %v454 = vadd.f32 0.0, %v453
          %v455 = vpop.f32.mrb[0].mxu0
          %456 = vmatprep.mubr.f32.mxu0 0.0
          %457 = vmatmul.mubr.f32.gmra.mrb[0].mxu0 %v348
          %v458 = vpop.f32.mrb[0].mxu0
          %v459 = vadd.f32 0.0, %v458
          %v460 = vpop.f32.mrb[0].mxu0
          %461 = vmatprep.mubr.f32.mxu0 0.0
          %462 = vmatmul.mubr.f32.gmra.mrb[0].mxu0 %v349
          %v463 = vpop.f32.mrb[0].mxu0
          %v464 = vadd.f32 0.0, %v463
          %v465 = vpop.f32.mrb[0].mxu0
          %466 = vmatprep.mubr.f32.mxu0 0.0
          %467 = vmatmul.mubr.f32.gmra.mrb[0].mxu0 %v350
          %v468 = vpop.f32.mrb[0].mxu0
          %v469 = vadd.f32 0.0, %v468
          %v470 = vpop.f32.mrb[0].mxu0
          %471 = vmatprep.mubr.f32.mxu0 0.0
          %472 = vmatmul.mubr.f32.gmra.mrb[0].mxu0 %v351
          %v473 = vpop.f32.mrb[0].mxu0
          %v474 = vadd.f32 0.0, %v473
          %v475 = vpop.f32.mrb[0].mxu0
          %476 = vmatprep.mubr.f32.mxu0 0.0
          %477 = vmatmul.mubr.f32.gmra.mrb[0].mxu0 %v352
          %v478 = vpop.f32.mrb[0].mxu0
          %v479 = vadd.f32 0.0, %v478
          %v480 = vpop.f32.mrb[0].mxu0
          %481 = vmatprep.mubr.f32.mxu0 0.0
          %482 = vmatmul.mubr.f32.gmra.mrb[0].mxu0 %v353
          %v483 = vpop.f32.mrb[0].mxu0
          %v484 = vadd.f32 0.0, %v483
          %v485 = vpop.f32.mrb[0].mxu0
          %486 = vmatprep.mubr.f32.mxu0 0.0
          %487 = vmatmul.mubr.f32.gmra.mrb[0].mxu0 %v354
          %v488 = vpop.f32.mrb[0].mxu0
          %v489 = vadd.f32 0.0, %v488
          %v490 = vpop.f32.mrb[0].mxu0
          %491 = vmatprep.mubr.f32.mxu0 0.0
          %492 = vmatmul.mubr.f32.gmra.mrb[0].mxu0 %v355
          %v493 = vpop.f32.mrb[0].mxu0
          %v494 = vadd.f32 0.0, %v493
          %v495 = vpop.f32.mrb[0].mxu0
          %496 = vmatprep.mubr.f32.mxu0 0.0
          %497 = vmatmul.mubr.f32.gmra.mrb[0].mxu0 %v356
          %v498 = vpop.f32.mrb[0].mxu0
          %v499 = vadd.f32 0.0, %v498
          %v500 = vpop.f32.mrb[0].mxu0
          %501 = vmatprep.mubr.f32.mxu0 0.0
          %502 = vmatmul.mubr.f32.gmra.mrb[0].mxu0 %v357
          %v503 = vpop.f32.mrb[0].mxu0
          %v504 = vadd.f32 0.0, %v503
          %v505 = vpop.f32.mrb[0].mxu0
          %506 = vmatprep.mubr.f32.mxu0 0.0
          %507 = vmatmul.mubr.f32.gmra.mrb[0].mxu0 %v358
          %v508 = vpop.f32.mrb[0].mxu0
          %v509 = vadd.f32 0.0, %v508
          %v510 = vpop.f32.mrb[0].mxu0
          %511 = vmatprep.mubr.f32.mxu0 0.0
          %512 = vmatmul.mubr.f32.gmra.mrb[0].mxu0 %v359
          %v513 = vpop.f32.mrb[0].mxu0
          %v514 = vadd.f32 0.0, %v513
          %v515 = vpop.f32.mrb[0].mxu0
          %516 = vmatprep.mubr.f32.mxu0 0.0
          %517 = vmatmul.mubr.f32.gmra.mrb[0].mxu0 %v360
          %v518 = vpop.f32.mrb[0].mxu0
          %v519 = vadd.f32 0.0, %v518
          %v520 = vpop.f32.mrb[0].mxu0
          %521 = vdwg.mxu0
          %v522 = vmul.f32 %v444, 0.5
          %v523 = vmul.f32 %v449, 0.5
          %v524 = vmul.f32 %v454, 0.5
          %v525 = vmul.f32 %v459, 0.5
          %v526 = vmul.f32 %v464, 0.5
          %v527 = vmul.f32 %v469, 0.5
          %v528 = vmul.f32 %v474, 0.5
          %v529 = vmul.f32 %v479, 0.5
          %v530 = vmul.f32 %v484, 0.5
          %v531 = vmul.f32 %v489, 0.5
          %v532 = vmul.f32 %v494, 0.5
          %v533 = vmul.f32 %v499, 0.5
          %v534 = vmul.f32 %v504, 0.5
          %v535 = vmul.f32 %v509, 0.5
          %v536 = vmul.f32 %v514, 0.5
          %v537 = vmul.f32 %v519, 0.5
          %v538 = vmul.f32 %v361, 0.5
          %v539 = vmul.f32 %v362, 0.5
          %v540 = vmul.f32 %v363, 0.5
          %v541 = vmul.f32 %v364, 0.5
          %v542 = vmul.f32 %v365, 0.5
          %v543 = vmul.f32 %v366, 0.5
          %v544 = vmul.f32 %v367, 0.5
          %v545 = vmul.f32 %v368, 0.5
          %v546 = vmul.f32 %v369, 0.5
          %v547 = vmul.f32 %v370, 0.5
          %v548 = vmul.f32 %v371, 0.5
          %v549 = vmul.f32 %v372, 0.5
          %v550 = vmul.f32 %v373, 0.5
          %v551 = vmul.f32 %v374, 0.5
          %v552 = vmul.f32 %v375, 0.5
          %v553 = vmul.f32 %v376, 0.5
          %v554 = vadd.f32 %v522, %v538
          %v555 = vadd.f32 %v523, %v539
          %v556 = vadd.f32 %v524, %v540
          %v557 = vadd.f32 %v525, %v541
          %v558 = vadd.f32 %v526, %v542
          %v559 = vadd.f32 %v527, %v543
          %v560 = vadd.f32 %v528, %v544
          %v561 = vadd.f32 %v529, %v545
          %v562 = vadd.f32 %v530, %v546
          %v563 = vadd.f32 %v531, %v547
          %v564 = vadd.f32 %v532, %v548
          %v565 = vadd.f32 %v533, %v549
          %v566 = vadd.f32 %v534, %v550
          %v567 = vadd.f32 %v535, %v551
          %v568 = vadd.f32 %v536, %v552
          %v569 = vadd.f32 %v537, %v553
          %570 = vst [vmem:[%s185] sm:$0xff] %v554
          %571 = vst [vmem:[%s185 + $0x8] sm:$0xff] %v555
          %572 = vst [vmem:[%s185 + $0x10] sm:$0xff] %v556
          %573 = vst [vmem:[%s185 + $0x18] sm:$0xff] %v557
          %574 = vst [vmem:[%s185 + $0x20] sm:$0xff] %v558
          %575 = vst [vmem:[%s185 + $0x28] sm:$0xff] %v559
          %576 = vst [vmem:[%s185 + $0x30] sm:$0xff] %v560
          %577 = vst [vmem:[%s185 + $0x38] sm:$0xff] %v561
          %578 = vst [vmem:[%s185 + $0x40] sm:$0xff] %v562
          %579 = vst [vmem:[%s185 + $0x48] sm:$0xff] %v563
          %580 = vst [vmem:[%s185 + $0x50] sm:$0xff] %v564
          %581 = vst [vmem:[%s185 + $0x58] sm:$0xff] %v565
          %582 = vst [vmem:[%s185 + $0x60] sm:$0xff] %v566
          %583 = vst [vmem:[%s185 + $0x68] sm:$0xff] %v567
          %584 = vst [vmem:[%s185 + $0x70] sm:$0xff] %v568
          %585 = vst [vmem:[%s185 + $0x78] sm:$0xff] %v569
        $region36: #{tpu_custom_call.1} parent=23 // pred_fallthru
          _
        %s586 = scalar_lea.vmem %s167, 128 [#allocation2]
        %v587 = vld [vmem:[%s586] sm:$0xff]
        %v588 = vld [vmem:[%s586 + $0x8] sm:$0xff]
        %v589 = vld [vmem:[%s586 + $0x10] sm:$0xff]
        %v590 = vld [vmem:[%s586 + $0x18] sm:$0xff]
        %v591 = vld [vmem:[%s586 + $0x20] sm:$0xff]
        %v592 = vld [vmem:[%s586 + $0x28] sm:$0xff]
        %v593 = vld [vmem:[%s586 + $0x30] sm:$0xff]
        %v594 = vld [vmem:[%s586 + $0x38] sm:$0xff]
        %v595 = vld [vmem:[%s586 + $0x40] sm:$0xff]
        %v596 = vld [vmem:[%s586 + $0x48] sm:$0xff]
        %v597 = vld [vmem:[%s586 + $0x50] sm:$0xff]
        %v598 = vld [vmem:[%s586 + $0x58] sm:$0xff]
        %v599 = vld [vmem:[%s586 + $0x60] sm:$0xff]
        %v600 = vld [vmem:[%s586 + $0x68] sm:$0xff]
        %v601 = vld [vmem:[%s586 + $0x70] sm:$0xff]
        %v602 = vld [vmem:[%s586 + $0x78] sm:$0xff]
        %v603 = vld [vmem:[%s185] sm:$0xff]
        %v604 = vld [vmem:[%s185 + $0x8] sm:$0xff]
        %v605 = vld [vmem:[%s185 + $0x10] sm:$0xff]
        %v606 = vld [vmem:[%s185 + $0x18] sm:$0xff]
        %v607 = vld [vmem:[%s185 + $0x20] sm:$0xff]
        %v608 = vld [vmem:[%s185 + $0x28] sm:$0xff]
        %v609 = vld [vmem:[%s185 + $0x30] sm:$0xff]
        %v610 = vld [vmem:[%s185 + $0x38] sm:$0xff]
        %v611 = vld [vmem:[%s185 + $0x40] sm:$0xff]
        %v612 = vld [vmem:[%s185 + $0x48] sm:$0xff]
        %v613 = vld [vmem:[%s185 + $0x50] sm:$0xff]
        %v614 = vld [vmem:[%s185 + $0x58] sm:$0xff]
        %v615 = vld [vmem:[%s185 + $0x60] sm:$0xff]
        %v616 = vld [vmem:[%s185 + $0x68] sm:$0xff]
        %v617 = vld [vmem:[%s185 + $0x70] sm:$0xff]
        %v618 = vld [vmem:[%s185 + $0x78] sm:$0xff]
        %619 = vmatprep.subr.mxu0 0.0
        %620 = vmatpush1.msra.mxu0 %v603
        %621 = vmatprep.subr.mxu0 0.0
        %622 = vmatpush1.msra.mxu0 %v604
        %623 = vmatprep.subr.mxu0 0.0
        %624 = vmatpush1.msra.mxu0 %v605
        %625 = vmatprep.subr.mxu0 0.0
        %626 = vmatpush1.msra.mxu0 %v606
        %627 = vmatprep.subr.mxu0 0.0
        %628 = vmatpush1.msra.mxu0 %v607
        %629 = vmatprep.subr.mxu0 0.0
        %630 = vmatpush1.msra.mxu0 %v608
        %631 = vmatprep.subr.mxu0 0.0
        %632 = vmatpush1.msra.mxu0 %v609
        %633 = vmatprep.subr.mxu0 0.0
        %634 = vmatpush1.msra.mxu0 %v610
        %635 = vmatprep.subr.mxu0 0.0
        %636 = vmatpush1.msra.mxu0 %v611
        %637 = vmatprep.subr.mxu0 0.0
        %638 = vmatpush1.msra.mxu0 %v612
        %639 = vmatprep.subr.mxu0 0.0
        %640 = vmatpush1.msra.mxu0 %v613
        %641 = vmatprep.subr.mxu0 0.0
        %642 = vmatpush1.msra.mxu0 %v614
        %643 = vmatprep.subr.mxu0 0.0
        %644 = vmatpush1.msra.mxu0 %v615
        %645 = vmatprep.subr.mxu0 0.0
        %646 = vmatpush1.msra.mxu0 %v616
        %647 = vmatprep.subr.mxu0 0.0
        %648 = vmatpush1.msra.mxu0 %v617
        %649 = vmatprep.subr.mxu0 0.0
        %650 = vmatpush1.msra.mxu0 %v618
        %651 = vmatprep.subr.mxu0 0.0
        %652 = vmatpush1.msra.mxu0 0.0
        %653 = vmatprep.subr.mxu0 0.0
        %654 = vmatpush1.msra.mxu0 0.0
        %655 = vmatprep.subr.mxu0 0.0
        %656 = vmatpush1.msra.mxu0 0.0
        %657 = vmatprep.subr.mxu0 0.0
        %658 = vmatpush1.msra.mxu0 0.0
        %659 = vmatprep.subr.mxu0 0.0
        %660 = vmatpush1.msra.mxu0 0.0
        %661 = vmatprep.subr.mxu0 0.0
        %662 = vmatpush1.msra.mxu0 0.0
        %663 = vmatprep.subr.mxu0 0.0
        %664 = vmatpush1.msra.mxu0 0.0
        %665 = vmatprep.subr.mxu0 0.0
        %666 = vmatpush1.msra.mxu0 0.0
        %667 = vmatprep.subr.mxu0 0.0
        %668 = vmatpush1.msra.mxu0 0.0
        %669 = vmatprep.subr.mxu0 0.0
        %670 = vmatpush1.msra.mxu0 0.0
        %671 = vmatprep.subr.mxu0 0.0
        %672 = vmatpush1.msra.mxu0 0.0
        %673 = vmatprep.subr.mxu0 0.0
        %674 = vmatpush1.msra.mxu0 0.0
        %675 = vmatprep.subr.mxu0 0.0
        %676 = vmatpush1.msra.mxu0 0.0
        %677 = vmatprep.subr.mxu0 0.0
        %678 = vmatpush1.msra.mxu0 0.0
        %679 = vmatprep.subr.mxu0 0.0
        %680 = vmatpush1.msra.mxu0 0.0
        %681 = vmatprep.subr.mxu0 0.0
        %682 = vmatpush1.msra.mxu0 0.0
        %683 = vmatprep.mubr.f32.mxu0 0.0
        %684 = vmatmul.mubr.f32.gmra.mrb[0].mxu0 %v587
        %v685 = vpop.f32.mrb[0].mxu0
        %v686 = vadd.f32 0.0, %v685
        %v687 = vpop.f32.mrb[0].mxu0
        %688 = vmatprep.mubr.f32.mxu0 0.0
        %689 = vmatmul.mubr.f32.gmra.mrb[0].mxu0 %v588
        %v690 = vpop.f32.mrb[0].mxu0
        %v691 = vadd.f32 0.0, %v690
        %v692 = vpop.f32.mrb[0].mxu0
        %693 = vmatprep.mubr.f32.mxu0 0.0
        %694 = vmatmul.mubr.f32.gmra.mrb[0].mxu0 %v589
        %v695 = vpop.f32.mrb[0].mxu0
        %v696 = vadd.f32 0.0, %v695
        %v697 = vpop.f32.mrb[0].mxu0
        %698 = vmatprep.mubr.f32.mxu0 0.0
        %699 = vmatmul.mubr.f32.gmra.mrb[0].mxu0 %v590
        %v700 = vpop.f32.mrb[0].mxu0
        %v701 = vadd.f32 0.0, %v700
        %v702 = vpop.f32.mrb[0].mxu0
        %703 = vmatprep.mubr.f32.mxu0 0.0
        %704 = vmatmul.mubr.f32.gmra.mrb[0].mxu0 %v591
        %v705 = vpop.f32.mrb[0].mxu0
        %v706 = vadd.f32 0.0, %v705
        %v707 = vpop.f32.mrb[0].mxu0
        %708 = vmatprep.mubr.f32.mxu0 0.0
        %709 = vmatmul.mubr.f32.gmra.mrb[0].mxu0 %v592
        %v710 = vpop.f32.mrb[0].mxu0
        %v711 = vadd.f32 0.0, %v710
        %v712 = vpop.f32.mrb[0].mxu0
        %713 = vmatprep.mubr.f32.mxu0 0.0
        %714 = vmatmul.mubr.f32.gmra.mrb[0].mxu0 %v593
        %v715 = vpop.f32.mrb[0].mxu0
        %v716 = vadd.f32 0.0, %v715
        %v717 = vpop.f32.mrb[0].mxu0
        %718 = vmatprep.mubr.f32.mxu0 0.0
        %719 = vmatmul.mubr.f32.gmra.mrb[0].mxu0 %v594
        %v720 = vpop.f32.mrb[0].mxu0
        %v721 = vadd.f32 0.0, %v720
        %v722 = vpop.f32.mrb[0].mxu0
        %723 = vmatprep.mubr.f32.mxu0 0.0
        %724 = vmatmul.mubr.f32.gmra.mrb[0].mxu0 %v595
        %v725 = vpop.f32.mrb[0].mxu0
        %v726 = vadd.f32 0.0, %v725
        %v727 = vpop.f32.mrb[0].mxu0
        %728 = vmatprep.mubr.f32.mxu0 0.0
        %729 = vmatmul.mubr.f32.gmra.mrb[0].mxu0 %v596
        %v730 = vpop.f32.mrb[0].mxu0
        %v731 = vadd.f32 0.0, %v730
        %v732 = vpop.f32.mrb[0].mxu0
        %733 = vmatprep.mubr.f32.mxu0 0.0
        %734 = vmatmul.mubr.f32.gmra.mrb[0].mxu0 %v597
        %v735 = vpop.f32.mrb[0].mxu0
        %v736 = vadd.f32 0.0, %v735
        %v737 = vpop.f32.mrb[0].mxu0
        %738 = vmatprep.mubr.f32.mxu0 0.0
        %739 = vmatmul.mubr.f32.gmra.mrb[0].mxu0 %v598
        %v740 = vpop.f32.mrb[0].mxu0
        %v741 = vadd.f32 0.0, %v740
        %v742 = vpop.f32.mrb[0].mxu0
        %743 = vmatprep.mubr.f32.mxu0 0.0
        %744 = vmatmul.mubr.f32.gmra.mrb[0].mxu0 %v599
        %v745 = vpop.f32.mrb[0].mxu0
        %v746 = vadd.f32 0.0, %v745
        %v747 = vpop.f32.mrb[0].mxu0
        %748 = vmatprep.mubr.f32.mxu0 0.0
        %749 = vmatmul.mubr.f32.gmra.mrb[0].mxu0 %v600
        %v750 = vpop.f32.mrb[0].mxu0
        %v751 = vadd.f32 0.0, %v750
        %v752 = vpop.f32.mrb[0].mxu0
        %753 = vmatprep.mubr.f32.mxu0 0.0
        %754 = vmatmul.mubr.f32.gmra.mrb[0].mxu0 %v601
        %v755 = vpop.f32.mrb[0].mxu0
        %v756 = vadd.f32 0.0, %v755
        %v757 = vpop.f32.mrb[0].mxu0
        %758 = vmatprep.mubr.f32.mxu0 0.0
        %759 = vmatmul.mubr.f32.gmra.mrb[0].mxu0 %v602
        %v760 = vpop.f32.mrb[0].mxu0
        %v761 = vadd.f32 0.0, %v760
        %v762 = vpop.f32.mrb[0].mxu0
        %763 = vdwg.mxu0
        %v764 = vmul.f32 %v686, 0.5
        %v765 = vmul.f32 %v691, 0.5
        %v766 = vmul.f32 %v696, 0.5
        %v767 = vmul.f32 %v701, 0.5
        %v768 = vmul.f32 %v706, 0.5
        %v769 = vmul.f32 %v711, 0.5
        %v770 = vmul.f32 %v716, 0.5
        %v771 = vmul.f32 %v721, 0.5
        %v772 = vmul.f32 %v726, 0.5
        %v773 = vmul.f32 %v731, 0.5
        %v774 = vmul.f32 %v736, 0.5
        %v775 = vmul.f32 %v741, 0.5
        %v776 = vmul.f32 %v746, 0.5
        %v777 = vmul.f32 %v751, 0.5
        %v778 = vmul.f32 %v756, 0.5
        %v779 = vmul.f32 %v761, 0.5
        %v780 = vmul.f32 %v603, 0.5
        %v781 = vmul.f32 %v604, 0.5
        %v782 = vmul.f32 %v605, 0.5
        %v783 = vmul.f32 %v606, 0.5
        %v784 = vmul.f32 %v607, 0.5
        %v785 = vmul.f32 %v608, 0.5
        %v786 = vmul.f32 %v609, 0.5
        %v787 = vmul.f32 %v610, 0.5
        %v788 = vmul.f32 %v611, 0.5
        %v789 = vmul.f32 %v612, 0.5
        %v790 = vmul.f32 %v613, 0.5
        %v791 = vmul.f32 %v614, 0.5
        %v792 = vmul.f32 %v615, 0.5
        %v793 = vmul.f32 %v616, 0.5
        %v794 = vmul.f32 %v617, 0.5
        %v795 = vmul.f32 %v618, 0.5
        %v796 = vadd.f32 %v764, %v780
        %v797 = vadd.f32 %v765, %v781
        %v798 = vadd.f32 %v766, %v782
        %v799 = vadd.f32 %v767, %v783
        %v800 = vadd.f32 %v768, %v784
        %v801 = vadd.f32 %v769, %v785
        %v802 = vadd.f32 %v770, %v786
        %v803 = vadd.f32 %v771, %v787
        %v804 = vadd.f32 %v772, %v788
        %v805 = vadd.f32 %v773, %v789
        %v806 = vadd.f32 %v774, %v790
        %v807 = vadd.f32 %v775, %v791
        %v808 = vadd.f32 %v776, %v792
        %v809 = vadd.f32 %v777, %v793
        %v810 = vadd.f32 %v778, %v794
        %v811 = vadd.f32 %v779, %v795
        %812 = vst [vmem:[%s185] sm:$0xff] %v796
        %813 = vst [vmem:[%s185 + $0x8] sm:$0xff] %v797
        %814 = vst [vmem:[%s185 + $0x10] sm:$0xff] %v798
        %815 = vst [vmem:[%s185 + $0x18] sm:$0xff] %v799
        %816 = vst [vmem:[%s185 + $0x20] sm:$0xff] %v800
        %817 = vst [vmem:[%s185 + $0x28] sm:$0xff] %v801
        %818 = vst [vmem:[%s185 + $0x30] sm:$0xff] %v802
        %819 = vst [vmem:[%s185 + $0x38] sm:$0xff] %v803
        %820 = vst [vmem:[%s185 + $0x40] sm:$0xff] %v804
        %821 = vst [vmem:[%s185 + $0x48] sm:$0xff] %v805
        %822 = vst [vmem:[%s185 + $0x50] sm:$0xff] %v806
        %823 = vst [vmem:[%s185 + $0x58] sm:$0xff] %v807
        %824 = vst [vmem:[%s185 + $0x60] sm:$0xff] %v808
        %825 = vst [vmem:[%s185 + $0x68] sm:$0xff] %v809
        %826 = vst [vmem:[%s185 + $0x70] sm:$0xff] %v810
        %827 = vst [vmem:[%s185 + $0x78] sm:$0xff] %v811
        %s828 = scalar_lea.vmem %s167, 256 [#allocation2]
        %v829 = vld [vmem:[%s828] sm:$0xff]
        %v830 = vld [vmem:[%s828 + $0x8] sm:$0xff]
        %v831 = vld [vmem:[%s828 + $0x10] sm:$0xff]
        %v832 = vld [vmem:[%s828 + $0x18] sm:$0xff]
        %v833 = vld [vmem:[%s828 + $0x20] sm:$0xff]
        %v834 = vld [vmem:[%s828 + $0x28] sm:$0xff]
        %v835 = vld [vmem:[%s828 + $0x30] sm:$0xff]
        %v836 = vld [vmem:[%s828 + $0x38] sm:$0xff]
        %v837 = vld [vmem:[%s828 + $0x40] sm:$0xff]
        %v838 = vld [vmem:[%s828 + $0x48] sm:$0xff]
        %v839 = vld [vmem:[%s828 + $0x50] sm:$0xff]
        %v840 = vld [vmem:[%s828 + $0x58] sm:$0xff]
        %v841 = vld [vmem:[%s828 + $0x60] sm:$0xff]
        %v842 = vld [vmem:[%s828 + $0x68] sm:$0xff]
        %v843 = vld [vmem:[%s828 + $0x70] sm:$0xff]
        %v844 = vld [vmem:[%s828 + $0x78] sm:$0xff]
        %v845 = vld [vmem:[%s185] sm:$0xff]
        %v846 = vld [vmem:[%s185 + $0x8] sm:$0xff]
        %v847 = vld [vmem:[%s185 + $0x10] sm:$0xff]
        %v848 = vld [vmem:[%s185 + $0x18] sm:$0xff]
        %v849 = vld [vmem:[%s185 + $0x20] sm:$0xff]
        %v850 = vld [vmem:[%s185 + $0x28] sm:$0xff]
        %v851 = vld [vmem:[%s185 + $0x30] sm:$0xff]
        %v852 = vld [vmem:[%s185 + $0x38] sm:$0xff]
        %v853 = vld [vmem:[%s185 + $0x40] sm:$0xff]
        %v854 = vld [vmem:[%s185 + $0x48] sm:$0xff]
        %v855 = vld [vmem:[%s185 + $0x50] sm:$0xff]
        %v856 = vld [vmem:[%s185 + $0x58] sm:$0xff]
        %v857 = vld [vmem:[%s185 + $0x60] sm:$0xff]
        %v858 = vld [vmem:[%s185 + $0x68] sm:$0xff]
        %v859 = vld [vmem:[%s185 + $0x70] sm:$0xff]
        %v860 = vld [vmem:[%s185 + $0x78] sm:$0xff]
        %861 = vmatprep.subr.mxu0 0.0
        %862 = vmatpush1.msra.mxu0 %v845
        %863 = vmatprep.subr.mxu0 0.0
        %864 = vmatpush1.msra.mxu0 %v846
        %865 = vmatprep.subr.mxu0 0.0
        %866 = vmatpush1.msra.mxu0 %v847
        %867 = vmatprep.subr.mxu0 0.0
        %868 = vmatpush1.msra.mxu0 %v848
        %869 = vmatprep.subr.mxu0 0.0
        %870 = vmatpush1.msra.mxu0 %v849
        %871 = vmatprep.subr.mxu0 0.0
        %872 = vmatpush1.msra.mxu0 %v850
        %873 = vmatprep.subr.mxu0 0.0
        %874 = vmatpush1.msra.mxu0 %v851
        %875 = vmatprep.subr.mxu0 0.0
        %876 = vmatpush1.msra.mxu0 %v852
        %877 = vmatprep.subr.mxu0 0.0
        %878 = vmatpush1.msra.mxu0 %v853
        %879 = vmatprep.subr.mxu0 0.0
        %880 = vmatpush1.msra.mxu0 %v854
        %881 = vmatprep.subr.mxu0 0.0
        %882 = vmatpush1.msra.mxu0 %v855
        %883 = vmatprep.subr.mxu0 0.0
        %884 = vmatpush1.msra.mxu0 %v856
        %885 = vmatprep.subr.mxu0 0.0
        %886 = vmatpush1.msra.mxu0 %v857
        %887 = vmatprep.subr.mxu0 0.0
        %888 = vmatpush1.msra.mxu0 %v858
        %889 = vmatprep.subr.mxu0 0.0
        %890 = vmatpush1.msra.mxu0 %v859
        %891 = vmatprep.subr.mxu0 0.0
        %892 = vmatpush1.msra.mxu0 %v860
        %893 = vmatprep.subr.mxu0 0.0
        %894 = vmatpush1.msra.mxu0 0.0
        %895 = vmatprep.subr.mxu0 0.0
        %896 = vmatpush1.msra.mxu0 0.0
        %897 = vmatprep.subr.mxu0 0.0
        %898 = vmatpush1.msra.mxu0 0.0
        %899 = vmatprep.subr.mxu0 0.0
        %900 = vmatpush1.msra.mxu0 0.0
        %901 = vmatprep.subr.mxu0 0.0
        %902 = vmatpush1.msra.mxu0 0.0
        %903 = vmatprep.subr.mxu0 0.0
        %904 = vmatpush1.msra.mxu0 0.0
        %905 = vmatprep.subr.mxu0 0.0
        %906 = vmatpush1.msra.mxu0 0.0
        %907 = vmatprep.subr.mxu0 0.0
        %908 = vmatpush1.msra.mxu0 0.0
        %909 = vmatprep.subr.mxu0 0.0
        %910 = vmatpush1.msra.mxu0 0.0
        %911 = vmatprep.subr.mxu0 0.0
        %912 = vmatpush1.msra.mxu0 0.0
        %913 = vmatprep.subr.mxu0 0.0
        %914 = vmatpush1.msra.mxu0 0.0
        %915 = vmatprep.subr.mxu0 0.0
        %916 = vmatpush1.msra.mxu0 0.0
        %917 = vmatprep.subr.mxu0 0.0
        %918 = vmatpush1.msra.mxu0 0.0
        %919 = vmatprep.subr.mxu0 0.0
        %920 = vmatpush1.msra.mxu0 0.0
        %921 = vmatprep.subr.mxu0 0.0
        %922 = vmatpush1.msra.mxu0 0.0
        %923 = vmatprep.subr.mxu0 0.0
        %924 = vmatpush1.msra.mxu0 0.0
        %925 = vmatprep.mubr.f32.mxu0 0.0
        %926 = vmatmul.mubr.f32.gmra.mrb[0].mxu0 %v829
        %v927 = vpop.f32.mrb[0].mxu0
        %v928 = vadd.f32 0.0, %v927
        %v929 = vpop.f32.mrb[0].mxu0
        %930 = vmatprep.mubr.f32.mxu0 0.0
        %931 = vmatmul.mubr.f32.gmra.mrb[0].mxu0 %v830
        %v932 = vpop.f32.mrb[0].mxu0
        %v933 = vadd.f32 0.0, %v932
        %v934 = vpop.f32.mrb[0].mxu0
        %935 = vmatprep.mubr.f32.mxu0 0.0
        %936 = vmatmul.mubr.f32.gmra.mrb[0].mxu0 %v831
        %v937 = vpop.f32.mrb[0].mxu0
        %v938 = vadd.f32 0.0, %v937
        %v939 = vpop.f32.mrb[0].mxu0
        %940 = vmatprep.mubr.f32.mxu0 0.0
        %941 = vmatmul.mubr.f32.gmra.mrb[0].mxu0 %v832
        %v942 = vpop.f32.mrb[0].mxu0
        %v943 = vadd.f32 0.0, %v942
        %v944 = vpop.f32.mrb[0].mxu0
        %945 = vmatprep.mubr.f32.mxu0 0.0
        %946 = vmatmul.mubr.f32.gmra.mrb[0].mxu0 %v833
        %v947 = vpop.f32.mrb[0].mxu0
        %v948 = vadd.f32 0.0, %v947
        %v949 = vpop.f32.mrb[0].mxu0
        %950 = vmatprep.mubr.f32.mxu0 0.0
        %951 = vmatmul.mubr.f32.gmra.mrb[0].mxu0 %v834
        %v952 = vpop.f32.mrb[0].mxu0
        %v953 = vadd.f32 0.0, %v952
        %v954 = vpop.f32.mrb[0].mxu0
        %955 = vmatprep.mubr.f32.mxu0 0.0
        %956 = vmatmul.mubr.f32.gmra.mrb[0].mxu0 %v835
        %v957 = vpop.f32.mrb[0].mxu0
        %v958 = vadd.f32 0.0, %v957
        %v959 = vpop.f32.mrb[0].mxu0
        %960 = vmatprep.mubr.f32.mxu0 0.0
        %961 = vmatmul.mubr.f32.gmra.mrb[0].mxu0 %v836
        %v962 = vpop.f32.mrb[0].mxu0
        %v963 = vadd.f32 0.0, %v962
        %v964 = vpop.f32.mrb[0].mxu0
        %965 = vmatprep.mubr.f32.mxu0 0.0
        %966 = vmatmul.mubr.f32.gmra.mrb[0].mxu0 %v837
        %v967 = vpop.f32.mrb[0].mxu0
        %v968 = vadd.f32 0.0, %v967
        %v969 = vpop.f32.mrb[0].mxu0
        %970 = vmatprep.mubr.f32.mxu0 0.0
        %971 = vmatmul.mubr.f32.gmra.mrb[0].mxu0 %v838
        %v972 = vpop.f32.mrb[0].mxu0
        %v973 = vadd.f32 0.0, %v972
        %v974 = vpop.f32.mrb[0].mxu0
        %975 = vmatprep.mubr.f32.mxu0 0.0
        %976 = vmatmul.mubr.f32.gmra.mrb[0].mxu0 %v839
        %v977 = vpop.f32.mrb[0].mxu0
        %v978 = vadd.f32 0.0, %v977
        %v979 = vpop.f32.mrb[0].mxu0
        %980 = vmatprep.mubr.f32.mxu0 0.0
        %981 = vmatmul.mubr.f32.gmra.mrb[0].mxu0 %v840
        %v982 = vpop.f32.mrb[0].mxu0
        %v983 = vadd.f32 0.0, %v982
        %v984 = vpop.f32.mrb[0].mxu0
        %985 = vmatprep.mubr.f32.mxu0 0.0
        %986 = vmatmul.mubr.f32.gmra.mrb[0].mxu0 %v841
        %v987 = vpop.f32.mrb[0].mxu0
        %v988 = vadd.f32 0.0, %v987
        %v989 = vpop.f32.mrb[0].mxu0
        %990 = vmatprep.mubr.f32.mxu0 0.0
        %991 = vmatmul.mubr.f32.gmra.mrb[0].mxu0 %v842
        %v992 = vpop.f32.mrb[0].mxu0
        %v993 = vadd.f32 0.0, %v992
        %v994 = vpop.f32.mrb[0].mxu0
        %995 = vmatprep.mubr.f32.mxu0 0.0
        %996 = vmatmul.mubr.f32.gmra.mrb[0].mxu0 %v843
        %v997 = vpop.f32.mrb[0].mxu0
        %v998 = vadd.f32 0.0, %v997
        %v999 = vpop.f32.mrb[0].mxu0
        %1000 = vmatprep.mubr.f32.mxu0 0.0
        %1001 = vmatmul.mubr.f32.gmra.mrb[0].mxu0 %v844
        %v1002 = vpop.f32.mrb[0].mxu0
        %v1003 = vadd.f32 0.0, %v1002
        %v1004 = vpop.f32.mrb[0].mxu0
        %1005 = vdwg.mxu0
        %v1006 = vmul.f32 %v928, 0.5
        %v1007 = vmul.f32 %v933, 0.5
        %v1008 = vmul.f32 %v938, 0.5
        %v1009 = vmul.f32 %v943, 0.5
        %v1010 = vmul.f32 %v948, 0.5
        %v1011 = vmul.f32 %v953, 0.5
        %v1012 = vmul.f32 %v958, 0.5
        %v1013 = vmul.f32 %v963, 0.5
        %v1014 = vmul.f32 %v968, 0.5
        %v1015 = vmul.f32 %v973, 0.5
        %v1016 = vmul.f32 %v978, 0.5
        %v1017 = vmul.f32 %v983, 0.5
        %v1018 = vmul.f32 %v988, 0.5
        %v1019 = vmul.f32 %v993, 0.5
        %v1020 = vmul.f32 %v998, 0.5
        %v1021 = vmul.f32 %v1003, 0.5
        %v1022 = vmul.f32 %v845, 0.5
        %v1023 = vmul.f32 %v846, 0.5
        %v1024 = vmul.f32 %v847, 0.5
        %v1025 = vmul.f32 %v848, 0.5
        %v1026 = vmul.f32 %v849, 0.5
        %v1027 = vmul.f32 %v850, 0.5
        %v1028 = vmul.f32 %v851, 0.5
        %v1029 = vmul.f32 %v852, 0.5
        %v1030 = vmul.f32 %v853, 0.5
        %v1031 = vmul.f32 %v854, 0.5
        %v1032 = vmul.f32 %v855, 0.5
        %v1033 = vmul.f32 %v856, 0.5
        %v1034 = vmul.f32 %v857, 0.5
        %v1035 = vmul.f32 %v858, 0.5
        %v1036 = vmul.f32 %v859, 0.5
        %v1037 = vmul.f32 %v860, 0.5
        %v1038 = vadd.f32 %v1006, %v1022
        %v1039 = vadd.f32 %v1007, %v1023
        %v1040 = vadd.f32 %v1008, %v1024
        %v1041 = vadd.f32 %v1009, %v1025
        %v1042 = vadd.f32 %v1010, %v1026
        %v1043 = vadd.f32 %v1011, %v1027
        %v1044 = vadd.f32 %v1012, %v1028
        %v1045 = vadd.f32 %v1013, %v1029
        %v1046 = vadd.f32 %v1014, %v1030
        %v1047 = vadd.f32 %v1015, %v1031
        %v1048 = vadd.f32 %v1016, %v1032
        %v1049 = vadd.f32 %v1017, %v1033
        %v1050 = vadd.f32 %v1018, %v1034
        %v1051 = vadd.f32 %v1019, %v1035
        %v1052 = vadd.f32 %v1020, %v1036
        %v1053 = vadd.f32 %v1021, %v1037
        %1054 = vst [vmem:[%s185] sm:$0xff] %v1038
        %1055 = vst [vmem:[%s185 + $0x8] sm:$0xff] %v1039
        %1056 = vst [vmem:[%s185 + $0x10] sm:$0xff] %v1040
        %1057 = vst [vmem:[%s185 + $0x18] sm:$0xff] %v1041
        %1058 = vst [vmem:[%s185 + $0x20] sm:$0xff] %v1042
        %1059 = vst [vmem:[%s185 + $0x28] sm:$0xff] %v1043
        %1060 = vst [vmem:[%s185 + $0x30] sm:$0xff] %v1044
        %1061 = vst [vmem:[%s185 + $0x38] sm:$0xff] %v1045
        %1062 = vst [vmem:[%s185 + $0x40] sm:$0xff] %v1046
        %1063 = vst [vmem:[%s185 + $0x48] sm:$0xff] %v1047
        %1064 = vst [vmem:[%s185 + $0x50] sm:$0xff] %v1048
        %1065 = vst [vmem:[%s185 + $0x58] sm:$0xff] %v1049
        %1066 = vst [vmem:[%s185 + $0x60] sm:$0xff] %v1050
        %1067 = vst [vmem:[%s185 + $0x68] sm:$0xff] %v1051
        %1068 = vst [vmem:[%s185 + $0x70] sm:$0xff] %v1052
        %1069 = vst [vmem:[%s185 + $0x78] sm:$0xff] %v1053
        %s1070 = sand.u32 %s75, 1
        %s1071 = scalar_lea.sflag [#allocation4], %s1070
        %s1072 = sand.u32 %s75, 1
        %s1073 = smul.addr %s1072, 128
        %s1074 = scalar_lea.vmem [#allocation5], %s1073
        // Predicated region
        $region37: #{tpu_custom_call.1} parent=23 // pred_check
          %p1075 = pneg %p85
        $region38: #{tpu_custom_call.1} parent=23 // pred_check_branch
          %1077 = sbr.rel (%p1075) target = $region40
        $region39: #{tpu_custom_call.1} parent=23 // pred_region
          %s1079 = ssub.s32 2048, 2048
          %1080 = vsyncadd %s1071, %s1079
          %s1081 = smul.addr %s23, 16
          %s1082 = sadd.s32 %s24, %s1081
          %s1083 = smul.addr %s1082, 128
          %s1084 = scalar_lea.hbm %s1, %s1083
          %s1085 = sshll.u32 %s1074, 4
          %s1086 = int_to_ptr.vmem [resolvable:$true] %s1085
          %1091 = dma.vmem_to_hbm [thread:$0]  %s1086, 2048, %s1084, %s1071, 128, 128, 8
        $region40: #{tpu_custom_call.1} parent=23 // pred_fallthru
          _
      $region24: #{tpu_custom_call.1} parent=5 // pred_fallthru
        _
      %p1092 = scmp.le.s32.totalorder 2, %s13
      // Predicated region
      $region41: #{tpu_custom_call.1} parent=5 // pred_check
        %p1093 = pneg %p1092
      $region42: #{tpu_custom_call.1} parent=5 // pred_check_branch
        %1095 = sbr.rel (%p1093) target = $region44
      $region43: #{tpu_custom_call.1} parent=5 // pred_region
        %s1096 = ssub.s32 %s13, 2
        // Predicated region
        $region45: #{tpu_custom_call.1} parent=43 // pred_check
          %p1097 = pneg %p91
        $region46: #{tpu_custom_call.1} parent=43 // pred_check_branch
          %1099 = sbr.rel (%p1097) target = $region48
        $region47: #{tpu_custom_call.1} parent=43 // pred_region
          %s1100 = sand.u32 %s76, 1
          %s1101 = scalar_lea.sflag [#allocation4], %s1100
          %s1102 = sand.u32 %s76, 1
          %s1103 = smul.addr %s1102, 128
          %s1104 = scalar_lea.vmem [#allocation5], %s1103
          %1105 = dma.done %s1101, 2048
        $region48: #{tpu_custom_call.1} parent=43 // pred_fallthru
          _
      $region44: #{tpu_custom_call.1} parent=5 // pred_fallthru
        _
    $region6: #{tpu_custom_call.1} parent=1 // loop_footer
      %s17 = sadd.s32 1, %s13
    $region7: #{tpu_custom_call.1} parent=1 // loop_footer_branch
      %12 = sbr.rel target = $region3
    $region8: #{tpu_custom_call.1} parent=1 // loop_exit
      _
    %1106 = vsyncpa [#allocation3], 1
    %s1107 = scalar_lea.sflag [#allocation3], 1
    %1108 = vsyncpa %s1107, 1
    %1109 = vsyncpa [#allocation4], 1
    %s1110 = scalar_lea.sflag [#allocation4], 1
    %1111 = vsyncpa %s1110, 1

</llo_original>
